<compile_context>
chip_gen: v5e
topology: v5e:2x2
jax: 0.10.0
libtpu: 0.0.40
codegen_flags: <defaults>
</compile_context>

<pallas_src>
import math

import jax
import jax.numpy as jnp
from jax.experimental import pallas as pl
from jax.experimental.pallas import tpu as pltpu


_PIXEL_TILE_CAP = 32768  # lanes; tuned so double-buffered footprint fits v5e scoped VMEM


def _conv1x1_tanh_kernel(x_ref, w_ref, b_ref, o_ref):
    # x_ref: (Cin, TP), w_ref: (Cout, Cin), b_ref: (Cout, 1), o_ref: (Cout, TP)
    x = x_ref[...]
    w = w_ref[...]
    cin = x.shape[0]

    if cin <= 8:
        # VPU broadcast-MAC: (Cout,1) lane-broadcast * (1,TP) sublane-broadcast,
        # statically unrolled over the tiny channel dim.  Avoids the K=4 MXU path.
        acc = w[:, 0:1] * x[0:1, :]
        for c in range(1, cin):
            acc = acc + w[:, c:c + 1] * x[c:c + 1, :]
    else:
        # Fallback for larger channel counts: let the MXU do it.
        acc = jnp.dot(w, x, preferred_element_type=jnp.float32)

    y = acc + b_ref[...]                     # (Cout,1) broadcast over lanes
    o_ref[...] = jnp.tanh(y).astype(o_ref.dtype)


def _pick_pixel_tile(hw, n, cap=_PIXEL_TILE_CAP, min_grid_steps=4):
    """Lane-dense pixel tile:
      - full extent if hw <= cap (always a legal block shape),
      - otherwise the largest multiple of 128 <= cap (ragged last block masked),
      - shrunk (multiples of 128) only if needed to give v7x's 2 TCs >= 4 steps.
    """
    if hw <= cap:
        tp = hw
    else:
        tp = (cap // 128) * 128

    def steps(t):
        return n * (-(-hw // t))

    while steps(tp) < min_grid_steps and tp > 128:
        cand = max(128, ((tp // 2) // 128) * 128)
        if cand == tp:
            break
        tp = cand
    return tp


def tail_block_forward(x_nchw, weight, bias, *, pixel_tile_cap=_PIXEL_TILE_CAP):
    """1x1 conv + tanh (the `tail_block.forward` hot path) as a Pallas kernel.

    x_nchw : (N, Cin, H, W) float32
    weight : (Cout, Cin, 1, 1) float32   (PyTorch Conv2d layout)
    bias   : (Cout,) float32
    returns: (N, Cout, H, W) float32
    """
    N, Cin, H, W = x_nchw.shape
    Cout = weight.shape[0]
    HW = H * W

    # Free (contiguous) views — no transposes, no padding, no extra HBM traffic.
    x3 = x_nchw.reshape(N, Cin, HW)          # (N, Cin, HW)
    w2d = weight.reshape(Cout, Cin)          # (Cout, Cin)
    b2d = bias.reshape(Cout, 1)              # (Cout, 1) -> sublane broadcast

    tp = _pick_pixel_tile(HW, N, cap=pixel_tile_cap)
    n_pix_tiles = pl.cdiv(HW, tp)

    flops = 2 * N * HW * Cin * Cout
    bytes_accessed = 4 * (N * HW * Cin + N * HW * Cout + Cin * Cout + Cout)
    transcendentals = N * HW * Cout

    out3 = pl.pallas_call(
        _conv1x1_tanh_kernel,
        out_shape=jax.ShapeDtypeStruct((N, Cout, HW), x_nchw.dtype),
        grid_spec=pltpu.PrefetchScalarGridSpec(
            num_scalar_prefetch=0,
            grid=(N, n_pix_tiles),
            in_specs=[
                # x tile: batch squeezed, full Cin, lane-dense pixel tile.
                # (TODO(synk): pipeline_mode=pl.Buffered(3) could help only if
                # tiles are forced tiny; unnecessary at >=32K-lane tiles.)
                pl.BlockSpec((None, Cin, tp), lambda n, p: (n, 0, p)),
                # full weight, resident across the grid
                pl.BlockSpec((Cout, Cin), lambda n, p: (0, 0)),
                # bias column, resident across the grid
                pl.BlockSpec((Cout, 1), lambda n, p: (0, 0)),
            ],
            out_specs=pl.BlockSpec((None, Cout, tp), lambda n, p: (n, 0, p)),
        ),
        compiler_params=pltpu.CompilerParams(
            dimension_semantics=("parallel", "parallel"),
        ),
        cost_estimate=pl.CostEstimate(
            flops=flops,
            bytes_accessed=bytes_accessed,
            transcendentals=transcendentals,
        ),
    )(x3, w2d, b2d)

    # Free reshape back to NCHW.
    return out3.reshape(N, Cout, H, W)


def init_tail_block_params(key, in_channels, out_channels):
    """Deterministic parameter init matching nn.Conv2d(C_in, C_out, 1) +
    torch.nn.init.xavier_uniform_ on the weight."""
    k_w, k_b = jax.random.split(key)
    fan_in = in_channels * 1 * 1
    fan_out = out_channels * 1 * 1
    # xavier_uniform_: U(-a, a), a = sqrt(6 / (fan_in + fan_out))
    a = math.sqrt(6.0 / (fan_in + fan_out))
    weight = jax.random.uniform(
        k_w, (out_channels, in_channels, 1, 1), jnp.float32, minval=-a, maxval=a
    )
    # PyTorch Conv2d default bias init: U(-1/sqrt(fan_in), 1/sqrt(fan_in))
    bb = 1.0 / math.sqrt(fan_in)
    bias = jax.random.uniform(
        k_b, (out_channels,), jnp.float32, minval=-bb, maxval=bb
    )
    return weight, bias


if __name__ == "__main__":
    key = jax.random.PRNGKey(0)
    k_x, k_p = jax.random.split(key)

    N, Cin, H, W = 2, 4, 16, 16
    Cout = 8

    x = jax.random.normal(k_x, (N, Cin, H, W), jnp.float32)
    weight, bias = init_tail_block_params(k_p, Cin, Cout)

    out = tail_block_forward(x, weight, bias)
    out = jax.block_until_ready(out)

    # Reference check in plain JAX (1x1 conv == channel matmul, then tanh).
    ref = jnp.tanh(
        jnp.einsum("nchw,oc->nohw", x, weight.reshape(Cout, Cin))
        + bias.reshape(1, Cout, 1, 1)
    )
    assert out.shape == (N, Cout, H, W)
    assert jnp.allclose(out, ref, atol=1e-5, rtol=1e-5)

    # Also exercise a ragged-tile shape (HW not a multiple of the tile) to make
    # sure the cdiv + masked-boundary path is correct.
    H2, W2 = 17, 15
    x2 = jax.random.normal(k_x, (N, Cin, H2, W2), jnp.float32)
    out2 = jax.block_until_ready(
        tail_block_forward(x2, weight, bias, pixel_tile_cap=128)
    )
    ref2 = jnp.tanh(
        jnp.einsum("nchw,oc->nohw", x2, weight.reshape(Cout, Cin))
        + bias.reshape(1, Cout, 1, 1)
    )
    assert out2.shape == (N, Cout, H2, W2)
    assert jnp.allclose(out2, ref2, atol=1e-5, rtol=1e-5)

    print("KERNEL_OK")
</pallas_src>

<mosaic_0001>
module attributes {stable_mosaic.version = 11 : i64} {
  func.func @_conv1x1_tanh_kernel(%arg0: i32, %arg1: i32, %arg2: memref<1x4x128xf32, #tpu.memory_space<vmem>>, %arg3: memref<8x4xf32, #tpu.memory_space<vmem>>, %arg4: memref<8x1xf32, #tpu.memory_space<vmem>>, %arg5: memref<1x8x128xf32, #tpu.memory_space<vmem>>) attributes {dimension_semantics = [#tpu.dimension_semantics<parallel>, #tpu.dimension_semantics<parallel>], iteration_bounds = array<i64: 2, 2>, scalar_prefetch = 0 : i64, scratch_operands = 0 : i64, tpu.core_type = #tpu.core_type<tc>, window_params = [{transform_indices = @transform_0, window_bounds = array<i64: 1, 4, 128>}, {pipeline_mode = #tpu.pipeline_mode<synchronous>, transform_indices = @transform_1, window_bounds = array<i64: 8, 4>}, {pipeline_mode = #tpu.pipeline_mode<synchronous>, transform_indices = @transform_2, window_bounds = array<i64: 8, 1>}, {transform_indices = @transform_3, window_bounds = array<i64: 1, 8, 128>}]} {
    %c0 = arith.constant 0 : index
    %c0_0 = arith.constant 0 : index
    %c0_1 = arith.constant 0 : index
    %0 = vector.load %arg2[%c0, %c0_0, %c0_1] : memref<1x4x128xf32, #tpu.memory_space<vmem>>, vector<1x4x128xf32>
    %1 = vector.shape_cast %0 : vector<1x4x128xf32> to vector<4x128xf32>
    %c0_2 = arith.constant 0 : index
    %c0_3 = arith.constant 0 : index
    %2 = vector.load %arg3[%c0_2, %c0_3] : memref<8x4xf32, #tpu.memory_space<vmem>>, vector<8x4xf32>
    %3 = vector.extract_strided_slice %2 {offsets = [0, 0], sizes = [8, 1], strides = [1, 1]} : vector<8x4xf32> to vector<8x1xf32>
    %4 = vector.extract_strided_slice %1 {offsets = [0, 0], sizes = [1, 128], strides = [1, 1]} : vector<4x128xf32> to vector<1x128xf32>
    %5 = vector.broadcast %3 : vector<8x1xf32> to vector<8x128xf32>
    %6 = vector.broadcast %4 : vector<1x128xf32> to vector<8x128xf32>
    %7 = arith.mulf %5, %6 : vector<8x128xf32>
    %8 = vector.extract_strided_slice %2 {offsets = [0, 1], sizes = [8, 1], strides = [1, 1]} : vector<8x4xf32> to vector<8x1xf32>
    %9 = vector.extract_strided_slice %1 {offsets = [1, 0], sizes = [1, 128], strides = [1, 1]} : vector<4x128xf32> to vector<1x128xf32>
    %10 = vector.broadcast %8 : vector<8x1xf32> to vector<8x128xf32>
    %11 = vector.broadcast %9 : vector<1x128xf32> to vector<8x128xf32>
    %12 = arith.mulf %10, %11 : vector<8x128xf32>
    %13 = arith.addf %7, %12 : vector<8x128xf32>
    %14 = vector.extract_strided_slice %2 {offsets = [0, 2], sizes = [8, 1], strides = [1, 1]} : vector<8x4xf32> to vector<8x1xf32>
    %15 = vector.extract_strided_slice %1 {offsets = [2, 0], sizes = [1, 128], strides = [1, 1]} : vector<4x128xf32> to vector<1x128xf32>
    %16 = vector.broadcast %14 : vector<8x1xf32> to vector<8x128xf32>
    %17 = vector.broadcast %15 : vector<1x128xf32> to vector<8x128xf32>
    %18 = arith.mulf %16, %17 : vector<8x128xf32>
    %19 = arith.addf %13, %18 : vector<8x128xf32>
    %20 = vector.extract_strided_slice %2 {offsets = [0, 3], sizes = [8, 1], strides = [1, 1]} : vector<8x4xf32> to vector<8x1xf32>
    %21 = vector.extract_strided_slice %1 {offsets = [3, 0], sizes = [1, 128], strides = [1, 1]} : vector<4x128xf32> to vector<1x128xf32>
    %22 = vector.broadcast %20 : vector<8x1xf32> to vector<8x128xf32>
    %23 = vector.broadcast %21 : vector<1x128xf32> to vector<8x128xf32>
    %24 = arith.mulf %22, %23 : vector<8x128xf32>
    %25 = arith.addf %19, %24 : vector<8x128xf32>
    %c0_4 = arith.constant 0 : index
    %c0_5 = arith.constant 0 : index
    %26 = vector.load %arg4[%c0_4, %c0_5] : memref<8x1xf32, #tpu.memory_space<vmem>>, vector<8x1xf32>
    %27 = vector.broadcast %26 : vector<8x1xf32> to vector<8x128xf32>
    %28 = arith.addf %25, %27 : vector<8x128xf32>
    %29 = math.tanh %28 : vector<8x128xf32>
    %c0_6 = arith.constant 0 : index
    %c0_7 = arith.constant 0 : index
    %c0_8 = arith.constant 0 : index
    %30 = vector.load %arg5[%c0_6, %c0_7, %c0_8] : memref<1x8x128xf32, #tpu.memory_space<vmem>>, vector<1x8x128xf32>
    %31 = vector.shape_cast %30 : vector<1x8x128xf32> to vector<8x128xf32>
    %32 = vector.shape_cast %29 : vector<8x128xf32> to vector<1x8x128xf32>
    tpu.vector_store %arg5[%c0_6, %c0_7, %c0_8], %32 {strides = array<i32>} : memref<1x8x128xf32, #tpu.memory_space<vmem>>, vector<1x8x128xf32>,
    return
  }
  func.func @transform_0(%arg0: i32, %arg1: i32) -> (i32, i32, i32) {
    %c0_i32 = arith.constant 0 : i32
    %c0_i32_0 = arith.constant 0 : i32
    return %arg0, %c0_i32, %arg1 : i32, i32, i32
  }
  func.func @transform_1(%arg0: i32, %arg1: i32) -> (i32, i32) {
    %c0_i32 = arith.constant 0 : i32
    %c0_i32_0 = arith.constant 0 : i32
    %c0_i32_1 = arith.constant 0 : i32
    return %c0_i32, %c0_i32_0 : i32, i32
  }
  func.func @transform_2(%arg0: i32, %arg1: i32) -> (i32, i32) {
    %c0_i32 = arith.constant 0 : i32
    %c0_i32_0 = arith.constant 0 : i32
    %c0_i32_1 = arith.constant 0 : i32
    return %c0_i32, %c0_i32_0 : i32, i32
  }
  func.func @transform_3(%arg0: i32, %arg1: i32) -> (i32, i32, i32) {
    %c0_i32 = arith.constant 0 : i32
    %c0_i32_0 = arith.constant 0 : i32
    return %arg0, %c0_i32, %arg1 : i32, i32, i32
  }
}

</mosaic_0001>

<llo_original>
// kernel: tpu_custom_call.1
$region0: #{tpu_custom_call.1}
  #allocation0 [shape = 'u32[]', space=smem, size = 0x4, offset = 0x4, fixed_abs, tag = 'smem constant byte address 0x4 - core index']
  #allocation1 [shape = 'u32[72,128]{1,0:T(1,128)}', space=vmem, size = 0x9000, scoped, tag = 'internal scratch']
  %s0 = inlined_call_operand.vmem [shape: f32[2,4,256], index: 0, kind: input, shape index: {}]
  %s1 = inlined_call_operand.vmem [shape: f32[8,4], index: 1, kind: input, shape index: {}]
  %s2 = inlined_call_operand.vmem [shape: f32[8,1], index: 2, kind: input, shape index: {}]
  %s3 = inlined_call_operand.hbm [shape: f32[2,8,256], index: 3, kind: output, shape index: {}]
  %s4 = sld [smem:[#allocation0]]
  $region45: #{tpu_custom_call.1} parent=0
    _
  %s6 = ssub.s32 1, %s4
  %s7 = scalar_select 0, %s6, %s4
  $region1: #{tpu_custom_call.1} parent=0
    #allocation2 [shape = 'u8[8192]{0}', space=vmem, size = 0x2000, scoped, tag = 'output window, operand 0']
    #allocation3 [shape = 's32[2]{0}', space=sflag, size = 0x8, scoped, tag = 'scoped memory for tpu_custom_call.1']
    %8 = vsyncpa [#allocation3], 0
    %s9 = scalar_lea.sflag [#allocation3], 1
    %10 = vsyncpa %s9, 0
    loop: start=0, step=1, limit=6
    $region2: #{tpu_custom_call.1} parent=1 // loop_pre_header
      _
    $region3: #{tpu_custom_call.1} parent=1 // loop_header
      %s12 = sphi 0, %s16
      %p13 = scmp.ge.s32.totalorder %s12, 6
      %s19 = sphi 0, %s31
      %s20 = sphi 0, %s27
      %s21 = sphi 0, %s19
      %s22 = sphi 0, %s20
      %s23 = sphi 0, %s21
      %s24 = sphi 0, %s22
      %s36 = sphi 0, %s38
      %s39 = sphi 0, %s36
      %s40 = sphi 0, %s39
      %s56 = sphi 0, %s40
      %s60 = sphi 0, %s60
      %s62 = sphi 0, %s60
      %s63 = sphi 0, %s62
      %s77 = sphi 0, %s63
      %s81 = sphi 0, %s81
      %s83 = sphi 0, %s81
      %s84 = sphi 0, %s83
      %s98 = sphi 0, %s84
      %s106 = sphi 0, %s108
      %s109 = sphi 0, %s106
      %s110 = sphi 0, %s109
      %s126 = sphi 0, %s110
    $region4: #{tpu_custom_call.1} parent=1 // loop_header_branch
      %15 = sbr.rel (%p13) target = $region8
    $region5: #{tpu_custom_call.1} parent=1 // loop_body
      %s17 = ssub.s32 %s12, 1
      %s18 = ssub.s32 %s12, 2
      %s25 = sadd.s32 1, %s20
      %p26 = scmp.ge.s32.totalorder %s25, 2
      %s27 = scalar_select %p26, 0, %s25
      %s28 = sadd.s32 1, %s19
      %s29 = scalar_select %p26, %s28, %s19
      %p30 = scmp.ge.s32.totalorder %s29, 2
      %s31 = scalar_select %p30, 0, %s29
      %s32 = ssub.s32 %s19, %s31
      %s33 = ssub.s32 %s20, %s27
      %s34 = sor.u32 %s32, %s33
      %p35 = scmp.eq.s32.totalorder %s34, 0
      %s37 = sadd.s32 %s36, 1
      %s38 = scalar_select %p35, %s36, %s37
      %p41 = pneg %p35
      %p42 = scmp.eq.s32.totalorder %s12, 3
      %p43 = por %p41, %p42
      %p44 = scmp.ne.s32.totalorder %s36, %s39
      %p45 = scmp.eq.s32.totalorder %s12, 0
      %p46 = por %p44, %p45
      %p47 = scmp.ne.s32.totalorder %s36, %s39
      %p48 = scmp.eq.s32.totalorder %s17, 3
      %p49 = por %p47, %p48
      %p50 = scmp.ne.s32.totalorder %s39, %s40
      %p51 = scmp.eq.s32.totalorder %s17, 0
      %p52 = por %p50, %p51
      %p53 = scmp.ne.s32.totalorder %s39, %s40
      %p54 = scmp.eq.s32.totalorder %s18, 3
      %p55 = por %p53, %p54
      %p57 = scmp.ne.s32.totalorder %s40, %s56
      %p58 = scmp.eq.s32.totalorder %s18, 0
      %p59 = por %p57, %p58
      %s61 = sadd.s32 %s60, 1
      %p64 = scmp.eq.s32.totalorder %s12, 3
      %p65 = scmp.ne.s32.totalorder %s60, %s62
      %p66 = scmp.eq.s32.totalorder %s12, 0
      %p67 = por %p65, %p66
      %p68 = scmp.ne.s32.totalorder %s60, %s62
      %p69 = scmp.eq.s32.totalorder %s17, 3
      %p70 = por %p68, %p69
      %p71 = scmp.ne.s32.totalorder %s62, %s63
      %p72 = scmp.eq.s32.totalorder %s17, 0
      %p73 = por %p71, %p72
      %p74 = scmp.ne.s32.totalorder %s62, %s63
      %p75 = scmp.eq.s32.totalorder %s18, 3
      %p76 = por %p74, %p75
      %p78 = scmp.ne.s32.totalorder %s63, %s77
      %p79 = scmp.eq.s32.totalorder %s18, 0
      %p80 = por %p78, %p79
      %s82 = sadd.s32 %s81, 1
      %p85 = scmp.eq.s32.totalorder %s12, 3
      %p86 = scmp.ne.s32.totalorder %s81, %s83
      %p87 = scmp.eq.s32.totalorder %s12, 0
      %p88 = por %p86, %p87
      %p89 = scmp.ne.s32.totalorder %s81, %s83
      %p90 = scmp.eq.s32.totalorder %s17, 3
      %p91 = por %p89, %p90
      %p92 = scmp.ne.s32.totalorder %s83, %s84
      %p93 = scmp.eq.s32.totalorder %s17, 0
      %p94 = por %p92, %p93
      %p95 = scmp.ne.s32.totalorder %s83, %s84
      %p96 = scmp.eq.s32.totalorder %s18, 3
      %p97 = por %p95, %p96
      %p99 = scmp.ne.s32.totalorder %s84, %s98
      %p100 = scmp.eq.s32.totalorder %s18, 0
      %p101 = por %p99, %p100
      %s102 = ssub.s32 %s19, %s31
      %s103 = ssub.s32 %s20, %s27
      %s104 = sor.u32 %s102, %s103
      %p105 = scmp.eq.s32.totalorder %s104, 0
      %s107 = sadd.s32 %s106, 1
      %s108 = scalar_select %p105, %s106, %s107
      %p111 = pneg %p105
      %p112 = scmp.eq.s32.totalorder %s12, 3
      %p113 = por %p111, %p112
      %p114 = scmp.ne.s32.totalorder %s106, %s109
      %p115 = scmp.eq.s32.totalorder %s12, 0
      %p116 = por %p114, %p115
      %p117 = scmp.ne.s32.totalorder %s106, %s109
      %p118 = scmp.eq.s32.totalorder %s17, 3
      %p119 = por %p117, %p118
      %p120 = scmp.ne.s32.totalorder %s109, %s110
      %p121 = scmp.eq.s32.totalorder %s17, 0
      %p122 = por %p120, %p121
      %p123 = scmp.ne.s32.totalorder %s109, %s110
      %p124 = scmp.eq.s32.totalorder %s18, 3
      %p125 = por %p123, %p124
      %p127 = scmp.ne.s32.totalorder %s110, %s126
      %p128 = scmp.eq.s32.totalorder %s18, 0
      %p129 = por %p127, %p128
      %p130 = scmp.le.s32.totalorder 1, %s12
      %p131 = scmp.lt.s32.totalorder %s12, 5
      %p132 = pnand %p130, %p131
      %p133 = pneg %p132
      // Predicated region
      $region9: #{tpu_custom_call.1} parent=5 // pred_check
        _
      $region10: #{tpu_custom_call.1} parent=5 // pred_check_branch
        %135 = sbr.rel (%p132) target = $region12
      $region11: #{tpu_custom_call.1} parent=5 // pred_region
        %s136 = ssub.s32 %s12, 1
        // Predicated region
        $region13: #{tpu_custom_call.1} parent=11 // pred_check
          %p137 = pneg %p73
        $region14: #{tpu_custom_call.1} parent=11 // pred_check_branch
          %139 = sbr.rel (%p137) target = $region16
        $region15: #{tpu_custom_call.1} parent=11 // pred_region
          _
        $region16: #{tpu_custom_call.1} parent=11 // pred_fallthru
          _
        // Predicated region
        $region17: #{tpu_custom_call.1} parent=11 // pred_check
          %p140 = pneg %p94
        $region18: #{tpu_custom_call.1} parent=11 // pred_check_branch
          %142 = sbr.rel (%p140) target = $region20
        $region19: #{tpu_custom_call.1} parent=11 // pred_region
          _
        $region20: #{tpu_custom_call.1} parent=11 // pred_fallthru
          _
      $region12: #{tpu_custom_call.1} parent=5 // pred_fallthru
        _
      %p143 = scmp.lt.s32.totalorder %s12, 4
      // Predicated region
      $region21: #{tpu_custom_call.1} parent=5 // pred_check
        %p144 = pneg %p143
      $region22: #{tpu_custom_call.1} parent=5 // pred_check_branch
        %146 = sbr.rel (%p144) target = $region24
      $region23: #{tpu_custom_call.1} parent=5 // pred_region
        // Predicated region
        $region25: #{tpu_custom_call.1} parent=23 // pred_check
          %p147 = pneg %p46
        $region26: #{tpu_custom_call.1} parent=23 // pred_check_branch
          %149 = sbr.rel (%p147) target = $region28
        $region27: #{tpu_custom_call.1} parent=23 // pred_region
          %p150 = scmp.lt.s32.totalorder %s19, 1
          %s151 = scalar_select %p150, %s19, 1
          %p152 = scmp.lt.s32.totalorder %s20, 1
          %s153 = scalar_select %p152, %s20, 1
          %s154 = smul.addr %s151, 2
          %s155 = sadd.s32 %s153, %s154
          %s156 = smul.addr %s155, 4
          %s157 = scalar_lea.vmem %s0, %s156
        $region28: #{tpu_custom_call.1} parent=23 // pred_fallthru
          _
      $region24: #{tpu_custom_call.1} parent=5 // pred_fallthru
        _
      %p158 = scmp.le.s32.totalorder 1, %s12
      %p159 = scmp.lt.s32.totalorder %s12, 5
      %p160 = pnand %p158, %p159
      %p161 = pneg %p160
      // Predicated region
      $region29: #{tpu_custom_call.1} parent=5 // pred_check
        _
      $region30: #{tpu_custom_call.1} parent=5 // pred_check_branch
        %163 = sbr.rel (%p160) target = $region32
      $region31: #{tpu_custom_call.1} parent=5 // pred_region
        %s164 = ssub.s32 %s12, 1
        %p165 = scmp.lt.s32.totalorder %s21, 1
        %s166 = scalar_select %p165, %s21, 1
        %p167 = scmp.lt.s32.totalorder %s22, 1
        %s168 = scalar_select %p167, %s22, 1
        %s169 = smul.addr %s166, 2
        %s170 = sadd.s32 %s168, %s169
        %s171 = smul.addr %s170, 4
        %s172 = scalar_lea.vmem %s0, %s171
        %p173 = pneg %p52
        %p174 = pneg %p49
        %p175 = pneg %p73
        %p176 = pneg %p70
        %p177 = pneg %p94
        %p178 = pneg %p91
        %p179 = pneg %p122
        %p180 = pneg %p119
        %s181 = sand.u32 %s109, 1
        %s182 = scalar_lea.sflag [#allocation3], %s181
        %s183 = sand.u32 %s109, 1
        %s184 = smul.addr %s183, 8
        %s185 = scalar_lea.vmem [#allocation2], %s184
        %p186 = scmp.lt.s32.totalorder %s21, 1
        %s187 = scalar_select %p186, %s21, 1
        %p188 = scmp.lt.s32.totalorder %s22, 1
        %s189 = scalar_select %p188, %s22, 1
        %s190 = smul.addr %s187, 2
        %s191 = sadd.s32 %s189, %s190
        %s192 = smul.addr %s191, 4
        %s193 = scalar_lea.vmem %s0, %s192
        %v194 = vld [vmem:[%s193] sm:$0xf]
        %v195 = vld [vmem:[%s1] sm:$0xff]
        %197 = vset.pattern.permute.xlu0 0
        %198 = vperm.xlu0 %197, %v195
        %v199 = vpop.permute.xlu0 %198
        %v201 = vperm.slane %v194, 0
        %v202 = vmul.f32 %v199, %v201
        %203 = vset.pattern.permute.xlu0 1
        %204 = vperm.xlu0 %203, %v195
        %v205 = vpop.permute.xlu0 %204
        %v207 = vperm.slane %v194, 1
        %v208 = vmul.f32 %v205, %v207
        %v209 = vadd.f32 %v202, %v208
        %210 = vset.pattern.permute.xlu0 2
        %211 = vperm.xlu0 %210, %v195
        %v212 = vpop.permute.xlu0 %211
        %v214 = vperm.slane %v194, 2
        %v215 = vmul.f32 %v212, %v214
        %v216 = vadd.f32 %v209, %v215
        %217 = vset.pattern.permute.xlu0 3
        %218 = vperm.xlu0 %217, %v195
        %v219 = vpop.permute.xlu0 %218
        %v221 = vperm.slane %v194, 3
        %v222 = vmul.f32 %v219, %v221
        %v223 = vadd.f32 %v216, %v222
        %v224 = vld [vmem:[%s2] sm:$0xff]
        %226 = vset.pattern.permute.xlu0 0
        %227 = vperm.xlu0 %226, %v224
        %v228 = vpop.permute.xlu0 %227
        %v230 = vadd.f32 %v223, %v228
        %v231 = vtanh.pop %v230
        %232 = vst [vmem:[%s185] sm:$0xff] %v231
        %s233 = sand.u32 %s109, 1
        %s234 = scalar_lea.sflag [#allocation3], %s233
        %s235 = sand.u32 %s109, 1
        %s236 = smul.addr %s235, 8
        %s237 = scalar_lea.vmem [#allocation2], %s236
        // Predicated region
        $region33: #{tpu_custom_call.1} parent=31 // pred_check
          %p238 = pneg %p119
        $region34: #{tpu_custom_call.1} parent=31 // pred_check_branch
          %240 = sbr.rel (%p238) target = $region36
        $region35: #{tpu_custom_call.1} parent=31 // pred_region
          %242 = vsyncadd %s234, 0
          %s243 = smul.addr %s21, 2
          %s244 = sadd.s32 %s22, %s243
          %s245 = smul.addr %s244, 8
          %s246 = scalar_lea.hbm %s3, %s245
          %s248 = sshll.u32 %s237, 4
          %s249 = int_to_ptr.vmem [resolvable:$true] %s248
          %s250 = sshll.u32 %s246, 4
          %s251 = int_to_ptr.hbm [resolvable:$true] %s250
          %253 = dma.vmem_to_hbm [thread:$0]  %s249, 128, %s251, %s234
        $region36: #{tpu_custom_call.1} parent=31 // pred_fallthru
          _
      $region32: #{tpu_custom_call.1} parent=5 // pred_fallthru
        _
      %p254 = scmp.le.s32.totalorder 2, %s12
      // Predicated region
      $region37: #{tpu_custom_call.1} parent=5 // pred_check
        %p255 = pneg %p254
      $region38: #{tpu_custom_call.1} parent=5 // pred_check_branch
        %257 = sbr.rel (%p255) target = $region40
      $region39: #{tpu_custom_call.1} parent=5 // pred_region
        %s258 = ssub.s32 %s12, 2
        // Predicated region
        $region41: #{tpu_custom_call.1} parent=39 // pred_check
          %p259 = pneg %p125
        $region42: #{tpu_custom_call.1} parent=39 // pred_check_branch
          %261 = sbr.rel (%p259) target = $region44
        $region43: #{tpu_custom_call.1} parent=39 // pred_region
          %s262 = sand.u32 %s110, 1
          %s263 = scalar_lea.sflag [#allocation3], %s262
          %s264 = sand.u32 %s110, 1
          %s265 = smul.addr %s264, 8
          %s266 = scalar_lea.vmem [#allocation2], %s265
          %268 = dma.done %s263, 128
        $region44: #{tpu_custom_call.1} parent=39 // pred_fallthru
          _
      $region40: #{tpu_custom_call.1} parent=5 // pred_fallthru
        _
    $region6: #{tpu_custom_call.1} parent=1 // loop_footer
      %s16 = sadd.s32 1, %s12
    $region7: #{tpu_custom_call.1} parent=1 // loop_footer_branch
      %11 = sbr.rel target = $region3
    $region8: #{tpu_custom_call.1} parent=1 // loop_exit
      _
    %269 = vsyncpa [#allocation3], 1
    %s270 = scalar_lea.sflag [#allocation3], 1
    %271 = vsyncpa %s270, 1

</llo_original>
